<compile_context>
chip_gen: v7x
topology: tpu7x:2x2x1
jax: 0.10.0
libtpu: 0.0.40
codegen_flags: <defaults>
</compile_context>

<pallas_src>
import functools

import jax
import jax.numpy as jnp
from jax import lax
from jax.experimental import pallas as pl
from jax.experimental.pallas import tpu as pltpu


def _round_up(x: int, m: int) -> int:
    return ((x + m - 1) // m) * m


def _vmem_budget_bytes() -> int:
    """Usable per-core VMEM budget with headroom for Mosaic-internal scratch."""
    phys = 64 * 1024 * 1024  # conservative default (v7x per-TC)
    try:
        phys = int(pltpu.get_tpu_info().vmem_capacity_bytes)
    except Exception:
        pass
    return max(min(int(phys * 0.80), phys - (8 << 20)), 16 << 20)


def _wide_mxu() -> bool:
    """True on chips with 256-wide MXUs (v6e / v7x)."""
    try:
        kind = jax.devices()[0].device_kind.lower()
    except Exception:
        return False
    return ("v6" in kind) or ("v7" in kind)


def _pad_dim(d: int, wide: bool) -> int:
    base = 256 if (wide and d > 128) else 128
    return _round_up(d, base)


def _maybe_pad2d(a, rows: int, cols: int):
    pr, pc = rows - a.shape[0], cols - a.shape[1]
    if pr == 0 and pc == 0:
        return a
    return jnp.pad(a, ((0, pr), (0, pc)))


# ----------------------------------------------------------------------------
# Kernels
# ----------------------------------------------------------------------------
def _fused_kernel(x_ref, w1_ref, b1_ref, w2_ref, b2_ref, o_ref, *,
                  num_chunks: int, chunk_rows: int):
    """Whole MLP on one row tile; weights fully resident in VMEM."""
    if num_chunks == 1:
        h = jnp.dot(x_ref[...], w1_ref[...], preferred_element_type=jnp.float32)
        h = jnp.maximum(h + b1_ref[...], 0.0)
        y = jnp.dot(h.astype(w2_ref.dtype), w2_ref[...],
                    preferred_element_type=jnp.float32)
        o_ref[...] = (y + b2_ref[...]).astype(o_ref.dtype)
        return

    # Sub-chunk the row tile so MXU (dot2 of chunk i) overlaps VPU epilogue of
    # chunk i+1 and the live f32 intermediate is chunk_rows x Dh instead of
    # tn x Dh.  Unrolled fori_loop keeps live ranges bounded for the scheduler.
    def body(c, carry):
        r0 = pl.multiple_of(c * chunk_rows, chunk_rows)
        xs = x_ref[pl.ds(r0, chunk_rows), :]
        h = jnp.dot(xs, w1_ref[...], preferred_element_type=jnp.float32)
        h = jnp.maximum(h + b1_ref[...], 0.0)
        y = jnp.dot(h.astype(w2_ref.dtype), w2_ref[...],
                    preferred_element_type=jnp.float32)
        o_ref[pl.ds(r0, chunk_rows), :] = (y + b2_ref[...]).astype(o_ref.dtype)
        return carry

    lax.fori_loop(0, num_chunks, body, 0, unroll=True)


def _dh_tiled_kernel(x_ref, w1_ref, b1_ref, w2_ref, b2_ref, o_ref, acc_ref):
    """Hidden dim tiled over a reduction grid axis; f32 accumulator scratch."""
    k = pl.program_id(1)

    @pl.when(k == 0)
    def _():
        acc_ref[...] = jnp.zeros_like(acc_ref)

    h = jnp.dot(x_ref[...], w1_ref[...], preferred_element_type=jnp.float32)
    h = jnp.maximum(h + b1_ref[...], 0.0)   # ReLU is per hidden unit -> safe to tile
    acc_ref[...] += jnp.dot(h.astype(w2_ref.dtype), w2_ref[...],
                            preferred_element_type=jnp.float32)

    @pl.when(k == pl.num_programs(1) - 1)
    def _():
        o_ref[...] = (acc_ref[...] + b2_ref[...]).astype(o_ref.dtype)


# ----------------------------------------------------------------------------
# Wrapper
# ----------------------------------------------------------------------------
def linnet_forward(x, w1, b1, w2, b2, *, tile_n=None, dh_tile=None,
                   compute_dtype=None, out_dtype=None):
    """x: [..., Din]; w1: [Din, Dh]; b1: [Dh]|[1,Dh]; w2: [Dh, Dout]; b2: [Dout]|[1,Dout].

    compute_dtype: None keeps the input dtype; jnp.bfloat16 feeds the MXU in bf16
      (f32 accumulation, f32 bias/ReLU) — recommended on v5e/v6e/v7x when the
      tolerance allows.
    out_dtype: None -> x's original dtype; pass jnp.bfloat16 to halve store traffic.
    dh_tile: force the hidden-dim reduction path with this tile (auto otherwise).
    """
    orig_shape = x.shape
    Din = orig_shape[-1]
    x2 = x.reshape(-1, Din) if x.ndim != 2 else x
    N = x2.shape[0]
    Dh = w1.shape[1]
    Dout = w2.shape[1]

    if out_dtype is None:
        out_dtype = x.dtype
    if compute_dtype is not None:
        x2 = x2.astype(compute_dtype)
        w1 = w1.astype(compute_dtype)
        w2 = w2.astype(compute_dtype)
    # Biases and the elementwise bias+ReLU path stay f32 on all chips.
    b1 = b1.astype(jnp.float32).reshape(1, Dh)
    b2 = b2.astype(jnp.float32).reshape(1, Dout)

    wide = _wide_mxu()
    Din_p = _pad_dim(Din, wide)
    Dh_p = _pad_dim(Dh, wide)
    Dout_p = _pad_dim(Dout, wide)

    budget = _vmem_budget_bytes()
    if tile_n is None:
        tile_n = 1024 if budget >= (96 << 20) else 512

    in_isz = jnp.dtype(x2.dtype).itemsize
    w_isz = jnp.dtype(w1.dtype).itemsize
    out_isz = jnp.dtype(out_dtype).itemsize

    def fused_footprint(tn):
        return (2 * tn * (Din_p * in_isz + Dout_p * out_isz)        # x/out double-buffered
                + (Din_p * Dh_p + Dh_p * Dout_p) * w_isz            # weights single-buffered
                + (Dh_p + Dout_p) * 4                               # f32 biases
                + tn * Dh_p * 4 + tn * Dout_p * 4)                  # f32 intermediates

    def dh_footprint(tn, tk):
        return (2 * tn * (Din_p * in_isz + Dout_p * out_isz)
                + 2 * (Din_p * tk + tk * Dout_p) * w_isz            # weight slabs double-buffered
                + 2 * (tk + Dout_p) * 4
                + tn * Dout_p * 4                                   # acc scratch
                + tn * tk * 4 + tn * Dout_p * 4)                    # f32 intermediates

    # --- row-tile selection (shrink to fit the per-generation budget) ---
    tn = min(_round_up(tile_n, 8), _round_up(N, 8))
    while tn > 8 and fused_footprint(tn) > budget:
        tn = max(8, _round_up(tn // 2, 8))

    use_dh = (dh_tile is not None) or (fused_footprint(tn) > budget)
    if use_dh:
        tk = _round_up(int(dh_tile), 128) if dh_tile is not None else 512
        tk = max(128, min(tk, Dh_p))
        while tk > 128 and dh_footprint(tn, tk) > budget:
            tk = max(128, _round_up(tk // 2, 128))
        while tn > 8 and dh_footprint(tn, tk) > budget:
            tn = max(8, _round_up(tn // 2, 8))
        Dh_p = _round_up(Dh_p, tk)   # grid needs Dh_p % tk == 0

    N_p = _round_up(N, tn)

    # --- conditional padding (skipped entirely when already aligned) ---
    x_p = _maybe_pad2d(x2, N_p, Din_p)
    w1_p = _maybe_pad2d(w1, Din_p, Dh_p)
    b1_p = _maybe_pad2d(b1, 1, Dh_p)
    w2_p = _maybe_pad2d(w2, Dh_p, Dout_p)
    b2_p = _maybe_pad2d(b2, 1, Dout_p)

    cost = pl.CostEstimate(
        flops=2 * N_p * (Din_p * Dh_p + Dh_p * Dout_p),
        transcendentals=0,
        bytes_accessed=int(x_p.size * in_isz
                           + (w1_p.size + w2_p.size) * w_isz
                           + (b1_p.size + b2_p.size) * 4
                           + N_p * Dout_p * out_isz))
    out_sds = jax.ShapeDtypeStruct((N_p, Dout_p), out_dtype)

    if not use_dh:
        # In-kernel sub-chunking factor (MXU/VPU overlap, smaller live f32 h).
        if tn % 4 == 0 and (tn // 4) % 8 == 0 and tn // 4 >= 128:
            num_chunks = 4
        elif tn % 2 == 0 and (tn // 2) % 8 == 0 and tn // 2 >= 128:
            num_chunks = 2
        else:
            num_chunks = 1
        kernel = functools.partial(_fused_kernel, num_chunks=num_chunks,
                                   chunk_rows=tn // num_chunks)
        vmem_limit = int(min(budget, max(2 * fused_footprint(tn), 16 << 20)))

        def call(single_buffer_weights):
            def wspec(shape):
                if single_buffer_weights:
                    # Constant index_map -> a second pipeline buffer is pure waste.
                    return pl.BlockSpec(shape, lambda i: (0, 0),
                                        pipeline_mode=pl.Buffered(1))
                return pl.BlockSpec(shape, lambda i: (0, 0))

            return pl.pallas_call(
                kernel,
                out_shape=out_sds,
                grid_spec=pltpu.PrefetchScalarGridSpec(
                    num_scalar_prefetch=0,
                    grid=(N_p // tn,),
                    in_specs=[
                        pl.BlockSpec((tn, Din_p), lambda i: (i, 0)),   # x tiled over rows
                        wspec((Din_p, Dh_p)),                          # w1 resident
                        wspec((1, Dh_p)),                              # b1 resident
                        wspec((Dh_p, Dout_p)),                         # w2 resident
                        wspec((1, Dout_p)),                            # b2 resident
                    ],
                    out_specs=pl.BlockSpec((tn, Dout_p), lambda i: (i, 0)),
                ),
                compiler_params=pltpu.CompilerParams(
                    # TODO(synk): on v7x, switch to pltpu.CORE_PARALLEL if profiling
                    # shows one TensorCore idle.
                    dimension_semantics=("parallel",),
                    vmem_limit_bytes=vmem_limit),
                cost_estimate=cost,
            )(x_p, w1_p, b1_p, w2_p, b2_p)

        try:
            y_p = call(True)
        except Exception:
            # Fallback if this jaxlib rejects Buffered(1) on pallas_call specs.
            y_p = call(False)
    else:
        vmem_limit = int(min(budget, max(2 * dh_footprint(tn, tk), 16 << 20)))
        y_p = pl.pallas_call(
            _dh_tiled_kernel,
            out_shape=out_sds,
            grid_spec=pltpu.PrefetchScalarGridSpec(
                num_scalar_prefetch=0,
                grid=(N_p // tn, Dh_p // tk),
                in_specs=[
                    pl.BlockSpec((tn, Din_p), lambda i, k: (i, 0)),   # x resident across k
                    pl.BlockSpec((Din_p, tk), lambda i, k: (0, k)),   # w1 column slab
                    pl.BlockSpec((1, tk), lambda i, k: (0, k)),       # b1 slab
                    pl.BlockSpec((tk, Dout_p), lambda i, k: (k, 0)),  # w2 row slab
                    pl.BlockSpec((1, Dout_p), lambda i, k: (0, 0)),   # b2
                ],
                out_specs=pl.BlockSpec((tn, Dout_p), lambda i, k: (i, 0)),
                scratch_shapes=[pltpu.VMEM((tn, Dout_p), jnp.float32)],
            ),
            compiler_params=pltpu.CompilerParams(
                dimension_semantics=("parallel", "arbitrary"),
                vmem_limit_bytes=vmem_limit),
            cost_estimate=cost,
        )(x_p, w1_p, b1_p, w2_p, b2_p)

    y = y_p
    if N_p != N or Dout_p != Dout:
        y = y[:N, :Dout]
    target_shape = tuple(orig_shape[:-1]) + (Dout,)
    if y.shape != target_shape:
        y = y.reshape(target_shape)
    return y


# ----------------------------------------------------------------------------
# Helpers / self-test
# ----------------------------------------------------------------------------
def init_linear_params(key, fan_in, fan_out, dtype=jnp.float32):
    """torch.nn.Linear-style init (uniform +/- 1/sqrt(fan_in)); W as [fan_in, fan_out]."""
    kw, kb = jax.random.split(key)
    bound = 1.0 / jnp.sqrt(jnp.asarray(fan_in, dtype))
    w = jax.random.uniform(kw, (fan_in, fan_out), dtype, -bound, bound)
    b = jax.random.uniform(kb, (1, fan_out), dtype, -bound, bound)
    return w, b


def _reference(x, w1, b1, w2, b2):
    h = jnp.maximum(x @ w1 + b1, 0.0)
    return h @ w2 + b2


if __name__ == "__main__":
    key = jax.random.PRNGKey(0)
    kx, k1, k2, kx2, k3, k4, kx3 = jax.random.split(key, 7)

    # --- Case 1: small shapes implied by the module, strict f32 check ---
    N, D_in, D_hid, D_out = 8, 32, 64, 16
    x = jax.random.normal(kx, (N, D_in), jnp.float32)
    w1, b1 = init_linear_params(k1, D_in, D_hid)
    w2, b2 = init_linear_params(k2, D_hid, D_out)

    y = jax.block_until_ready(linnet_forward(x, w1, b1, w2, b2))
    y_ref = _reference(x, w1, b1, w2, b2)
    assert y.shape == (N, D_out)
    assert jnp.allclose(y, y_ref, atol=1e-5, rtol=1e-5), "f32 mismatch vs reference"

    # --- Case 2: multi-tile grid (N not a multiple of the tile), f32 ---
    N2 = 300
    x2 = jax.random.normal(kx2, (N2, D_in), jnp.float32)
    y2 = jax.block_until_ready(linnet_forward(x2, w1, b1, w2, b2, tile_n=128))
    y2_ref = _reference(x2, w1, b1, w2, b2)
    assert y2.shape == (N2, D_out)
    assert jnp.allclose(y2, y2_ref, atol=1e-5, rtol=1e-5), "tiled mismatch vs reference"

    # --- Case 3: bf16-fed MXU (f32 accumulation), relaxed tolerance ---
    y_bf16 = jax.block_until_ready(
        linnet_forward(x2, w1, b1, w2, b2, tile_n=128, compute_dtype=jnp.bfloat16))
    assert y_bf16.shape == (N2, D_out)
    assert jnp.allclose(y_bf16, y2_ref, atol=5e-2, rtol=5e-2), "bf16 mismatch vs reference"

    # --- Case 3b: bf16 output (halved store traffic) ---
    y_bf16o = jax.block_until_ready(
        linnet_forward(x2, w1, b1, w2, b2, tile_n=128,
                       compute_dtype=jnp.bfloat16, out_dtype=jnp.bfloat16))
    assert y_bf16o.dtype == jnp.bfloat16
    assert jnp.allclose(y_bf16o.astype(jnp.float32), y2_ref, atol=1e-1, rtol=1e-1), \
        "bf16-out mismatch vs reference"

    # --- Case 4: large row tile -> in-kernel sub-chunked path, f32 strict ---
    N3 = 1024
    x3 = jax.random.normal(kx3, (N3, D_in), jnp.float32)
    y3 = jax.block_until_ready(linnet_forward(x3, w1, b1, w2, b2, tile_n=512))
    y3_ref = _reference(x3, w1, b1, w2, b2)
    assert y3.shape == (N3, D_out)
    assert jnp.allclose(y3, y3_ref, atol=1e-5, rtol=1e-5), "chunked mismatch vs reference"

    # --- Case 5: forced Dh-reduction path (weights tiled over hidden dim) ---
    D_hid2 = 384
    w1b, b1b = init_linear_params(k3, D_in, D_hid2)
    w2b, b2b = init_linear_params(k4, D_hid2, D_out)
    y5 = jax.block_until_ready(
        linnet_forward(x2, w1b, b1b, w2b, b2b, tile_n=128, dh_tile=128))
    y5_ref = _reference(x2, w1b, b1b, w2b, b2b)
    assert y5.shape == (N2, D_out)
    assert jnp.allclose(y5, y5_ref, atol=1e-4, rtol=1e-4), "Dh-tiled mismatch vs reference"

    print("KERNEL_OK")
</pallas_src>

<mosaic_0001>
module attributes {stable_mosaic.version = 11 : i64} {
  func.func @_fused_kernel(%arg0: i32, %arg1: memref<8x128xf32, #tpu.memory_space<vmem>>, %arg2: memref<128x128xf32, #tpu.memory_space<vmem>>, %arg3: memref<1x128xf32, #tpu.memory_space<vmem>>, %arg4: memref<128x128xf32, #tpu.memory_space<vmem>>, %arg5: memref<1x128xf32, #tpu.memory_space<vmem>>, %arg6: memref<8x128xf32, #tpu.memory_space<vmem>>) attributes {dimension_semantics = [#tpu.dimension_semantics<parallel>], iteration_bounds = array<i64: 1>, scalar_prefetch = 0 : i64, scratch_operands = 0 : i64, tpu.core_type = #tpu.core_type<tc>, window_params = [{transform_indices = @transform_0, window_bounds = array<i64: 8, 128>}, {pipeline_mode = #tpu.pipeline_mode<synchronous>, transform_indices = @transform_1, window_bounds = array<i64: 128, 128>}, {pipeline_mode = #tpu.pipeline_mode<synchronous>, transform_indices = @transform_2, window_bounds = array<i64: 1, 128>}, {pipeline_mode = #tpu.pipeline_mode<synchronous>, transform_indices = @transform_3, window_bounds = array<i64: 128, 128>}, {pipeline_mode = #tpu.pipeline_mode<synchronous>, transform_indices = @transform_4, window_bounds = array<i64: 1, 128>}, {transform_indices = @transform_5, window_bounds = array<i64: 8, 128>}]} {
    %c0 = arith.constant 0 : index
    %c0_0 = arith.constant 0 : index
    %0 = vector.load %arg1[%c0, %c0_0] : memref<8x128xf32, #tpu.memory_space<vmem>>, vector<8x128xf32>
    %c0_1 = arith.constant 0 : index
    %c0_2 = arith.constant 0 : index
    %1 = vector.load %arg2[%c0_1, %c0_2] : memref<128x128xf32, #tpu.memory_space<vmem>>, vector<128x128xf32>
    %cst = arith.constant dense<0.000000e+00> : vector<8x128xf32>
    %2 = tpu.matmul %0, %1, %cst {dimension_numbers = #tpu.dot_dimension_numbers<[1], [0], [0], [1], [0, 0, 1, 1], [], []>} : vector<8x128xf32>, vector<128x128xf32>, vector<8x128xf32> -> vector<8x128xf32>
    %c0_3 = arith.constant 0 : index
    %c0_4 = arith.constant 0 : index
    %3 = vector.load %arg3[%c0_3, %c0_4] : memref<1x128xf32, #tpu.memory_space<vmem>>, vector<1x128xf32>
    %4 = vector.broadcast %3 : vector<1x128xf32> to vector<8x128xf32>
    %5 = arith.addf %2, %4 : vector<8x128xf32>
    %cst_5 = arith.constant 0.000000e+00 : f32
    %6 = vector.broadcast %cst_5 : f32 to vector<8x128xf32>
    %7 = arith.maximumf %5, %6 : vector<8x128xf32>
    %c0_6 = arith.constant 0 : index
    %c0_7 = arith.constant 0 : index
    %8 = vector.load %arg4[%c0_6, %c0_7] : memref<128x128xf32, #tpu.memory_space<vmem>>, vector<128x128xf32>
    %cst_8 = arith.constant dense<0.000000e+00> : vector<8x128xf32>
    %9 = tpu.matmul %7, %8, %cst_8 {dimension_numbers = #tpu.dot_dimension_numbers<[1], [0], [0], [1], [0, 0, 1, 1], [], []>} : vector<8x128xf32>, vector<128x128xf32>, vector<8x128xf32> -> vector<8x128xf32>
    %c0_9 = arith.constant 0 : index
    %c0_10 = arith.constant 0 : index
    %10 = vector.load %arg5[%c0_9, %c0_10] : memref<1x128xf32, #tpu.memory_space<vmem>>, vector<1x128xf32>
    %11 = vector.broadcast %10 : vector<1x128xf32> to vector<8x128xf32>
    %12 = arith.addf %9, %11 : vector<8x128xf32>
    %c0_11 = arith.constant 0 : index
    %c0_12 = arith.constant 0 : index
    %13 = vector.load %arg6[%c0_11, %c0_12] : memref<8x128xf32, #tpu.memory_space<vmem>>, vector<8x128xf32>
    tpu.vector_store %arg6[%c0_11, %c0_12], %12 {strides = array<i32>} : memref<8x128xf32, #tpu.memory_space<vmem>>, vector<8x128xf32>,
    return
  }
  func.func @transform_0(%arg0: i32) -> (i32, i32) {
    %c0_i32 = arith.constant 0 : i32
    %c0_i32_0 = arith.constant 0 : i32
    return %arg0, %c0_i32 : i32, i32
  }
  func.func @transform_1(%arg0: i32) -> (i32, i32) {
    %c0_i32 = arith.constant 0 : i32
    %c0_i32_0 = arith.constant 0 : i32
    %c0_i32_1 = arith.constant 0 : i32
    return %c0_i32, %c0_i32_0 : i32, i32
  }
  func.func @transform_2(%arg0: i32) -> (i32, i32) {
    %c0_i32 = arith.constant 0 : i32
    %c0_i32_0 = arith.constant 0 : i32
    %c0_i32_1 = arith.constant 0 : i32
    return %c0_i32, %c0_i32_0 : i32, i32
  }
  func.func @transform_3(%arg0: i32) -> (i32, i32) {
    %c0_i32 = arith.constant 0 : i32
    %c0_i32_0 = arith.constant 0 : i32
    %c0_i32_1 = arith.constant 0 : i32
    return %c0_i32, %c0_i32_0 : i32, i32
  }
  func.func @transform_4(%arg0: i32) -> (i32, i32) {
    %c0_i32 = arith.constant 0 : i32
    %c0_i32_0 = arith.constant 0 : i32
    %c0_i32_1 = arith.constant 0 : i32
    return %c0_i32, %c0_i32_0 : i32, i32
  }
  func.func @transform_5(%arg0: i32) -> (i32, i32) {
    %c0_i32 = arith.constant 0 : i32
    %c0_i32_0 = arith.constant 0 : i32
    return %arg0, %c0_i32 : i32, i32
  }
}

module attributes {stable_mosaic.version = 11 : i64} {
  func.func @_fused_kernel(%arg0: i32, %arg1: memref<8x128xf32, #tpu.memory_space<vmem>>, %arg2: memref<128x128xf32, #tpu.memory_space<vmem>>, %arg3: memref<1x128xf32, #tpu.memory_space<vmem>>, %arg4: memref<128x128xf32, #tpu.memory_space<vmem>>, %arg5: memref<1x128xf32, #tpu.memory_space<vmem>>, %arg6: memref<8x128xf32, #tpu.memory_space<vmem>>) attributes {dimension_semantics = [#tpu.dimension_semantics<parallel>], iteration_bounds = array<i64: 1>, scalar_prefetch = 0 : i64, scratch_operands = 0 : i64, tpu.core_type = #tpu.core_type<tc>, window_params = [{transform_indices = @transform_0, window_bounds = array<i64: 8, 128>}, {pipeline_mode = #tpu.pipeline_mode<synchronous>, transform_indices = @transform_1, window_bounds = array<i64: 128, 128>}, {pipeline_mode = #tpu.pipeline_mode<synchronous>, transform_indices = @transform_2, window_bounds = array<i64: 1, 128>}, {pipeline_mode = #tpu.pipeline_mode<synchronous>, transform_indices = @transform_3, window_bounds = array<i64: 128, 128>}, {pipeline_mode = #tpu.pipeline_mode<synchronous>, transform_indices = @transform_4, window_bounds = array<i64: 1, 128>}, {transform_indices = @transform_5, window_bounds = array<i64: 8, 128>}]} {
    %c0 = arith.constant 0 : index
    %c0_0 = arith.constant 0 : index
    %0 = vector.load %arg1[%c0, %c0_0] : memref<8x128xf32, #tpu.memory_space<vmem>>, vector<8x128xf32>
    %c0_1 = arith.constant 0 : index
    %c0_2 = arith.constant 0 : index
    %1 = vector.load %arg2[%c0_1, %c0_2] : memref<128x128xf32, #tpu.memory_space<vmem>>, vector<128x128xf32>
    %cst = arith.constant dense<0.000000e+00> : vector<8x128xf32>
    %2 = tpu.matmul %0, %1, %cst {dimension_numbers = #tpu.dot_dimension_numbers<[1], [0], [0], [1], [0, 0, 1, 1], [], []>} : vector<8x128xf32>, vector<128x128xf32>, vector<8x128xf32> -> vector<8x128xf32>
    %c0_3 = arith.constant 0 : index
    %c0_4 = arith.constant 0 : index
    %3 = vector.load %arg3[%c0_3, %c0_4] : memref<1x128xf32, #tpu.memory_space<vmem>>, vector<1x128xf32>
    %4 = vector.broadcast %3 : vector<1x128xf32> to vector<8x128xf32>
    %5 = arith.addf %2, %4 : vector<8x128xf32>
    %cst_5 = arith.constant 0.000000e+00 : f32
    %6 = vector.broadcast %cst_5 : f32 to vector<8x128xf32>
    %7 = arith.maximumf %5, %6 : vector<8x128xf32>
    %c0_6 = arith.constant 0 : index
    %c0_7 = arith.constant 0 : index
    %8 = vector.load %arg4[%c0_6, %c0_7] : memref<128x128xf32, #tpu.memory_space<vmem>>, vector<128x128xf32>
    %cst_8 = arith.constant dense<0.000000e+00> : vector<8x128xf32>
    %9 = tpu.matmul %7, %8, %cst_8 {dimension_numbers = #tpu.dot_dimension_numbers<[1], [0], [0], [1], [0, 0, 1, 1], [], []>} : vector<8x128xf32>, vector<128x128xf32>, vector<8x128xf32> -> vector<8x128xf32>
    %c0_9 = arith.constant 0 : index
    %c0_10 = arith.constant 0 : index
    %10 = vector.load %arg5[%c0_9, %c0_10] : memref<1x128xf32, #tpu.memory_space<vmem>>, vector<1x128xf32>
    %11 = vector.broadcast %10 : vector<1x128xf32> to vector<8x128xf32>
    %12 = arith.addf %9, %11 : vector<8x128xf32>
    %c0_11 = arith.constant 0 : index
    %c0_12 = arith.constant 0 : index
    %13 = vector.load %arg6[%c0_11, %c0_12] : memref<8x128xf32, #tpu.memory_space<vmem>>, vector<8x128xf32>
    tpu.vector_store %arg6[%c0_11, %c0_12], %12 {strides = array<i32>} : memref<8x128xf32, #tpu.memory_space<vmem>>, vector<8x128xf32>,
    return
  }
  func.func @transform_0(%arg0: i32) -> (i32, i32) {
    %c0_i32 = arith.constant 0 : i32
    %c0_i32_0 = arith.constant 0 : i32
    return %arg0, %c0_i32 : i32, i32
  }
  func.func @transform_1(%arg0: i32) -> (i32, i32) {
    %c0_i32 = arith.constant 0 : i32
    %c0_i32_0 = arith.constant 0 : i32
    %c0_i32_1 = arith.constant 0 : i32
    return %c0_i32, %c0_i32_0 : i32, i32
  }
  func.func @transform_2(%arg0: i32) -> (i32, i32) {
    %c0_i32 = arith.constant 0 : i32
    %c0_i32_0 = arith.constant 0 : i32
    %c0_i32_1 = arith.constant 0 : i32
    return %c0_i32, %c0_i32_0 : i32, i32
  }
  func.func @transform_3(%arg0: i32) -> (i32, i32) {
    %c0_i32 = arith.constant 0 : i32
    %c0_i32_0 = arith.constant 0 : i32
    %c0_i32_1 = arith.constant 0 : i32
    return %c0_i32, %c0_i32_0 : i32, i32
  }
  func.func @transform_4(%arg0: i32) -> (i32, i32) {
    %c0_i32 = arith.constant 0 : i32
    %c0_i32_0 = arith.constant 0 : i32
    %c0_i32_1 = arith.constant 0 : i32
    return %c0_i32, %c0_i32_0 : i32, i32
  }
  func.func @transform_5(%arg0: i32) -> (i32, i32) {
    %c0_i32 = arith.constant 0 : i32
    %c0_i32_0 = arith.constant 0 : i32
    return %arg0, %c0_i32 : i32, i32
  }
}

</mosaic_0001>

<llo_original>
// kernel: tpu_custom_call.1
$region0: #{tpu_custom_call.1}
  #allocation0 [shape = 'u32[]', space=smem, size = 0x4, offset = 0x4, fixed_abs, tag = 'smem constant byte address 0x4 - core index']
  #allocation1 [shape = 'u32[144,128]{1,0:T(1,128)}', space=vmem, size = 0x12000, scoped, tag = 'internal scratch']
  %s0 = inlined_call_operand.hbm [shape: f32[8,128], index: 0, kind: input, shape index: {}]
  %s1 = inlined_call_operand.hbm [shape: f32[128,128], index: 1, kind: input, shape index: {}]
  %s2 = inlined_call_operand.vmem [shape: f32[1,128], index: 2, kind: input, shape index: {}]
  %s3 = inlined_call_operand.hbm [shape: f32[128,128], index: 3, kind: input, shape index: {}]
  %s4 = inlined_call_operand.vmem [shape: f32[1,128], index: 4, kind: input, shape index: {}]
  %s5 = inlined_call_operand.hbm [shape: f32[8,128], index: 5, kind: output, shape index: {}]
  %s6 = sld [smem:[#allocation0]]
  $region42: #{tpu_custom_call.1} parent=0
    _
  %s8 = ssub.s32 1, %s6
  %s9 = scalar_select 0, %s8, %s6
  $region1: #{tpu_custom_call.1} parent=0
    #allocation2 [shape = 'u8[4096]{0}', space=vmem, size = 0x1000, scoped, tag = 'input window, operand 0, single buffered']
    #allocation3 [shape = 's32[1]{0}', space=sflag, size = 0x4, scoped, tag = 'scoped memory for tpu_custom_call.1']
    #allocation4 [shape = 's32[1]{0}', space=sflag, size = 0x4, scoped, tag = 'scoped memory for tpu_custom_call.1']
    #allocation5 [shape = 'u8[65536]{0}', space=vmem, size = 0x10000, scoped, tag = 'input window, operand 1, single buffered']
    #allocation6 [shape = 's32[1]{0}', space=sflag, size = 0x4, scoped, tag = 'scoped memory for tpu_custom_call.1']
    #allocation7 [shape = 'u8[65536]{0}', space=vmem, size = 0x10000, scoped, tag = 'input window, operand 3, single buffered']
    #allocation8 [shape = 'u8[4096]{0}', space=vmem, size = 0x1000, scoped, tag = 'output window, operand 0, single buffered']
    %10 = vsyncpa [#allocation3], 0
    %11 = vsyncpa [#allocation6], 0
    %12 = vsyncpa [#allocation4], 0
    // Predicated region
    $region2: #{tpu_custom_call.1} parent=1 // pred_check
      _
    $region3: #{tpu_custom_call.1} parent=1 // pred_check_branch
      %14 = sbr.rel (0) target = $region5
    $region4: #{tpu_custom_call.1} parent=1 // pred_region
      %s16 = ssub.s32 128, 128
      %17 = vsyncadd [#allocation3], %s16
      %s19 = sshll.u32 [#allocation2], 4
      %s20 = int_to_ptr.vmem [resolvable:$true] %s19
      %22 = dma.hbm_to_vmem [thread:$0]  %s0, 128, %s20, [#allocation3]
    $region5: #{tpu_custom_call.1} parent=1 // pred_fallthru
      _
    // Predicated region
    $region6: #{tpu_custom_call.1} parent=1 // pred_check
      _
    $region7: #{tpu_custom_call.1} parent=1 // pred_check_branch
      %24 = sbr.rel (0) target = $region9
    $region8: #{tpu_custom_call.1} parent=1 // pred_region
      %s26 = ssub.s32 2048, 2048
      %27 = vsyncadd [#allocation6], %s26
      %s28 = sshll.u32 [#allocation5], 4
      %s29 = int_to_ptr.vmem [resolvable:$true] %s28
      %34 = dma.hbm_to_vmem [thread:$0]  %s1, 2048, %s29, [#allocation6], 128, 128, 8
    $region9: #{tpu_custom_call.1} parent=1 // pred_fallthru
      _
    // Predicated region
    $region10: #{tpu_custom_call.1} parent=1 // pred_check
      _
    $region11: #{tpu_custom_call.1} parent=1 // pred_check_branch
      %36 = sbr.rel (0) target = $region13
    $region12: #{tpu_custom_call.1} parent=1 // pred_region
      _
    $region13: #{tpu_custom_call.1} parent=1 // pred_fallthru
      _
    // Predicated region
    $region14: #{tpu_custom_call.1} parent=1 // pred_check
      _
    $region15: #{tpu_custom_call.1} parent=1 // pred_check_branch
      %38 = sbr.rel (0) target = $region17
    $region16: #{tpu_custom_call.1} parent=1 // pred_region
      %s40 = ssub.s32 2048, 2048
      %41 = vsyncadd [#allocation6], %s40
      %s42 = sshll.u32 [#allocation7], 4
      %s43 = int_to_ptr.vmem [resolvable:$true] %s42
      %48 = dma.hbm_to_vmem [thread:$0]  %s3, 2048, %s43, [#allocation6], 128, 128, 8
    $region17: #{tpu_custom_call.1} parent=1 // pred_fallthru
      _
    // Predicated region
    $region18: #{tpu_custom_call.1} parent=1 // pred_check
      _
    $region19: #{tpu_custom_call.1} parent=1 // pred_check_branch
      %50 = sbr.rel (0) target = $region21
    $region20: #{tpu_custom_call.1} parent=1 // pred_region
      _
    $region21: #{tpu_custom_call.1} parent=1 // pred_fallthru
      _
    // Predicated region
    $region22: #{tpu_custom_call.1} parent=1 // pred_check
      _
    $region23: #{tpu_custom_call.1} parent=1 // pred_check_branch
      %52 = sbr.rel (0) target = $region25
    $region24: #{tpu_custom_call.1} parent=1 // pred_region
      %53 = dma.done [#allocation3], 128
    $region25: #{tpu_custom_call.1} parent=1 // pred_fallthru
      _
    // Predicated region
    $region26: #{tpu_custom_call.1} parent=1 // pred_check
      _
    $region27: #{tpu_custom_call.1} parent=1 // pred_check_branch
      %55 = sbr.rel (0) target = $region29
    $region28: #{tpu_custom_call.1} parent=1 // pred_region
      %56 = dma.done [#allocation6], 2048
    $region29: #{tpu_custom_call.1} parent=1 // pred_fallthru
      _
    // Predicated region
    $region30: #{tpu_custom_call.1} parent=1 // pred_check
      _
    $region31: #{tpu_custom_call.1} parent=1 // pred_check_branch
      %58 = sbr.rel (0) target = $region33
    $region32: #{tpu_custom_call.1} parent=1 // pred_region
      %59 = dma.done [#allocation6], 2048
    $region33: #{tpu_custom_call.1} parent=1 // pred_fallthru
      _
    %v60 = vld [vmem:[#allocation2] sm:$0xff]
    %v61 = vld [vmem:[#allocation5] sm:$0xff]
    %v62 = vld [vmem:[#allocation5 + $0x8] sm:$0xff]
    %v63 = vld [vmem:[#allocation5 + $0x10] sm:$0xff]
    %v64 = vld [vmem:[#allocation5 + $0x18] sm:$0xff]
    %v65 = vld [vmem:[#allocation5 + $0x20] sm:$0xff]
    %v66 = vld [vmem:[#allocation5 + $0x28] sm:$0xff]
    %v67 = vld [vmem:[#allocation5 + $0x30] sm:$0xff]
    %v68 = vld [vmem:[#allocation5 + $0x38] sm:$0xff]
    %v69 = vld [vmem:[#allocation5 + $0x40] sm:$0xff]
    %v70 = vld [vmem:[#allocation5 + $0x48] sm:$0xff]
    %v71 = vld [vmem:[#allocation5 + $0x50] sm:$0xff]
    %v72 = vld [vmem:[#allocation5 + $0x58] sm:$0xff]
    %v73 = vld [vmem:[#allocation5 + $0x60] sm:$0xff]
    %v74 = vld [vmem:[#allocation5 + $0x68] sm:$0xff]
    %v75 = vld [vmem:[#allocation5 + $0x70] sm:$0xff]
    %v76 = vld [vmem:[#allocation5 + $0x78] sm:$0xff]
    %v77 = vld [vmem:[%s2] sm:$0x1]
    %v79 = vlaneseq
    %v80 = vshrl.u32 %v79, 7
    %v81 = vsub.s32 0, %v80
    %v82 = vrot.slane %v77, %v81
    %84 = vmatprep.subr.mxu0 0.0
    %85 = vmatpush1.msra.mxu0 %v61
    %86 = vmatprep.subr.mxu0 0.0
    %87 = vmatpush1.msra.mxu0 %v62
    %88 = vmatprep.subr.mxu0 0.0
    %89 = vmatpush1.msra.mxu0 %v63
    %90 = vmatprep.subr.mxu0 0.0
    %91 = vmatpush1.msra.mxu0 %v64
    %92 = vmatprep.subr.mxu0 0.0
    %93 = vmatpush1.msra.mxu0 %v65
    %94 = vmatprep.subr.mxu0 0.0
    %95 = vmatpush1.msra.mxu0 %v66
    %96 = vmatprep.subr.mxu0 0.0
    %97 = vmatpush1.msra.mxu0 %v67
    %98 = vmatprep.subr.mxu0 0.0
    %99 = vmatpush1.msra.mxu0 %v68
    %100 = vmatprep.subr.mxu0 0.0
    %101 = vmatpush1.msra.mxu0 %v69
    %102 = vmatprep.subr.mxu0 0.0
    %103 = vmatpush1.msra.mxu0 %v70
    %104 = vmatprep.subr.mxu0 0.0
    %105 = vmatpush1.msra.mxu0 %v71
    %106 = vmatprep.subr.mxu0 0.0
    %107 = vmatpush1.msra.mxu0 %v72
    %108 = vmatprep.subr.mxu0 0.0
    %109 = vmatpush1.msra.mxu0 %v73
    %110 = vmatprep.subr.mxu0 0.0
    %111 = vmatpush1.msra.mxu0 %v74
    %112 = vmatprep.subr.mxu0 0.0
    %113 = vmatpush1.msra.mxu0 %v75
    %114 = vmatprep.subr.mxu0 0.0
    %115 = vmatpush1.msra.mxu0 %v76
    %116 = vmatprep.subr.mxu0 0.0
    %117 = vmatpush1.msra.mxu0 0.0
    %118 = vmatprep.subr.mxu0 0.0
    %119 = vmatpush1.msra.mxu0 0.0
    %120 = vmatprep.subr.mxu0 0.0
    %121 = vmatpush1.msra.mxu0 0.0
    %122 = vmatprep.subr.mxu0 0.0
    %123 = vmatpush1.msra.mxu0 0.0
    %124 = vmatprep.subr.mxu0 0.0
    %125 = vmatpush1.msra.mxu0 0.0
    %126 = vmatprep.subr.mxu0 0.0
    %127 = vmatpush1.msra.mxu0 0.0
    %128 = vmatprep.subr.mxu0 0.0
    %129 = vmatpush1.msra.mxu0 0.0
    %130 = vmatprep.subr.mxu0 0.0
    %131 = vmatpush1.msra.mxu0 0.0
    %132 = vmatprep.subr.mxu0 0.0
    %133 = vmatpush1.msra.mxu0 0.0
    %134 = vmatprep.subr.mxu0 0.0
    %135 = vmatpush1.msra.mxu0 0.0
    %136 = vmatprep.subr.mxu0 0.0
    %137 = vmatpush1.msra.mxu0 0.0
    %138 = vmatprep.subr.mxu0 0.0
    %139 = vmatpush1.msra.mxu0 0.0
    %140 = vmatprep.subr.mxu0 0.0
    %141 = vmatpush1.msra.mxu0 0.0
    %142 = vmatprep.subr.mxu0 0.0
    %143 = vmatpush1.msra.mxu0 0.0
    %144 = vmatprep.subr.mxu0 0.0
    %145 = vmatpush1.msra.mxu0 0.0
    %146 = vmatprep.subr.mxu0 0.0
    %147 = vmatpush1.msra.mxu0 0.0
    %148 = vmatprep.mubr.f32.mxu0 0.0
    %149 = vmatmul.mubr.f32.gmra.mrb[0].mxu0 %v60
    %v150 = vpop.f32.mrb[0].mxu0
    %v151 = vadd.f32 %v82, %v150
    %v152 = vpop.f32.mrb[0].mxu0
    %153 = vdwg.mxu0
    %v154 = vmax.f32 %v151, 0.0
    %v155 = vld [vmem:[#allocation7] sm:$0xff]
    %v156 = vld [vmem:[#allocation7 + $0x8] sm:$0xff]
    %v157 = vld [vmem:[#allocation7 + $0x10] sm:$0xff]
    %v158 = vld [vmem:[#allocation7 + $0x18] sm:$0xff]
    %v159 = vld [vmem:[#allocation7 + $0x20] sm:$0xff]
    %v160 = vld [vmem:[#allocation7 + $0x28] sm:$0xff]
    %v161 = vld [vmem:[#allocation7 + $0x30] sm:$0xff]
    %v162 = vld [vmem:[#allocation7 + $0x38] sm:$0xff]
    %v163 = vld [vmem:[#allocation7 + $0x40] sm:$0xff]
    %v164 = vld [vmem:[#allocation7 + $0x48] sm:$0xff]
    %v165 = vld [vmem:[#allocation7 + $0x50] sm:$0xff]
    %v166 = vld [vmem:[#allocation7 + $0x58] sm:$0xff]
    %v167 = vld [vmem:[#allocation7 + $0x60] sm:$0xff]
    %v168 = vld [vmem:[#allocation7 + $0x68] sm:$0xff]
    %v169 = vld [vmem:[#allocation7 + $0x70] sm:$0xff]
    %v170 = vld [vmem:[#allocation7 + $0x78] sm:$0xff]
    %v171 = vld [vmem:[%s4] sm:$0x1]
    %v173 = vlaneseq
    %v174 = vshrl.u32 %v173, 7
    %v175 = vsub.s32 0, %v174
    %v176 = vrot.slane %v171, %v175
    %178 = vmatprep.subr.mxu0 0.0
    %179 = vmatpush1.msra.mxu0 %v155
    %180 = vmatprep.subr.mxu0 0.0
    %181 = vmatpush1.msra.mxu0 %v156
    %182 = vmatprep.subr.mxu0 0.0
    %183 = vmatpush1.msra.mxu0 %v157
    %184 = vmatprep.subr.mxu0 0.0
    %185 = vmatpush1.msra.mxu0 %v158
    %186 = vmatprep.subr.mxu0 0.0
    %187 = vmatpush1.msra.mxu0 %v159
    %188 = vmatprep.subr.mxu0 0.0
    %189 = vmatpush1.msra.mxu0 %v160
    %190 = vmatprep.subr.mxu0 0.0
    %191 = vmatpush1.msra.mxu0 %v161
    %192 = vmatprep.subr.mxu0 0.0
    %193 = vmatpush1.msra.mxu0 %v162
    %194 = vmatprep.subr.mxu0 0.0
    %195 = vmatpush1.msra.mxu0 %v163
    %196 = vmatprep.subr.mxu0 0.0
    %197 = vmatpush1.msra.mxu0 %v164
    %198 = vmatprep.subr.mxu0 0.0
    %199 = vmatpush1.msra.mxu0 %v165
    %200 = vmatprep.subr.mxu0 0.0
    %201 = vmatpush1.msra.mxu0 %v166
    %202 = vmatprep.subr.mxu0 0.0
    %203 = vmatpush1.msra.mxu0 %v167
    %204 = vmatprep.subr.mxu0 0.0
    %205 = vmatpush1.msra.mxu0 %v168
    %206 = vmatprep.subr.mxu0 0.0
    %207 = vmatpush1.msra.mxu0 %v169
    %208 = vmatprep.subr.mxu0 0.0
    %209 = vmatpush1.msra.mxu0 %v170
    %210 = vmatprep.subr.mxu0 0.0
    %211 = vmatpush1.msra.mxu0 0.0
    %212 = vmatprep.subr.mxu0 0.0
    %213 = vmatpush1.msra.mxu0 0.0
    %214 = vmatprep.subr.mxu0 0.0
    %215 = vmatpush1.msra.mxu0 0.0
    %216 = vmatprep.subr.mxu0 0.0
    %217 = vmatpush1.msra.mxu0 0.0
    %218 = vmatprep.subr.mxu0 0.0
    %219 = vmatpush1.msra.mxu0 0.0
    %220 = vmatprep.subr.mxu0 0.0
    %221 = vmatpush1.msra.mxu0 0.0
    %222 = vmatprep.subr.mxu0 0.0
    %223 = vmatpush1.msra.mxu0 0.0
    %224 = vmatprep.subr.mxu0 0.0
    %225 = vmatpush1.msra.mxu0 0.0
    %226 = vmatprep.subr.mxu0 0.0
    %227 = vmatpush1.msra.mxu0 0.0
    %228 = vmatprep.subr.mxu0 0.0
    %229 = vmatpush1.msra.mxu0 0.0
    %230 = vmatprep.subr.mxu0 0.0
    %231 = vmatpush1.msra.mxu0 0.0
    %232 = vmatprep.subr.mxu0 0.0
    %233 = vmatpush1.msra.mxu0 0.0
    %234 = vmatprep.subr.mxu0 0.0
    %235 = vmatpush1.msra.mxu0 0.0
    %236 = vmatprep.subr.mxu0 0.0
    %237 = vmatpush1.msra.mxu0 0.0
    %238 = vmatprep.subr.mxu0 0.0
    %239 = vmatpush1.msra.mxu0 0.0
    %240 = vmatprep.subr.mxu0 0.0
    %241 = vmatpush1.msra.mxu0 0.0
    %242 = vmatprep.mubr.f32.mxu0 0.0
    %243 = vmatmul.mubr.f32.gmra.mrb[0].mxu0 %v154
    %v244 = vpop.f32.mrb[0].mxu0
    %v245 = vadd.f32 %v176, %v244
    %v246 = vpop.f32.mrb[0].mxu0
    %247 = vdwg.mxu0
    %248 = vst [vmem:[#allocation8] sm:$0xff] %v245
    // Predicated region
    $region34: #{tpu_custom_call.1} parent=1 // pred_check
      _
    $region35: #{tpu_custom_call.1} parent=1 // pred_check_branch
      %250 = sbr.rel (0) target = $region37
    $region36: #{tpu_custom_call.1} parent=1 // pred_region
      %s252 = ssub.s32 128, 128
      %253 = vsyncadd [#allocation4], %s252
      %s255 = sshll.u32 [#allocation8], 4
      %s256 = int_to_ptr.vmem [resolvable:$true] %s255
      %258 = dma.vmem_to_hbm [thread:$0]  %s256, 128, %s5, [#allocation4]
    $region37: #{tpu_custom_call.1} parent=1 // pred_fallthru
      _
    // Predicated region
    $region38: #{tpu_custom_call.1} parent=1 // pred_check
      _
    $region39: #{tpu_custom_call.1} parent=1 // pred_check_branch
      %260 = sbr.rel (0) target = $region41
    $region40: #{tpu_custom_call.1} parent=1 // pred_region
      %261 = dma.done [#allocation4], 128
    $region41: #{tpu_custom_call.1} parent=1 // pred_fallthru
      _
    %262 = vsyncpa [#allocation3], 1
    %263 = vsyncpa [#allocation6], 1
    %264 = vsyncpa [#allocation4], 1

// kernel: tpu_custom_call.1
$region0: #{tpu_custom_call.1}
  #allocation0 [shape = 'u32[]', space=smem, size = 0x4, offset = 0x4, fixed_abs, tag = 'smem constant byte address 0x4 - core index']
  #allocation1 [shape = 'u32[144,128]{1,0:T(1,128)}', space=vmem, size = 0x12000, scoped, tag = 'internal scratch']
  %s0 = inlined_call_operand.hbm [shape: f32[8,128], index: 0, kind: input, shape index: {}]
  %s1 = inlined_call_operand.hbm [shape: f32[128,128], index: 1, kind: input, shape index: {}]
  %s2 = inlined_call_operand.vmem [shape: f32[1,128], index: 2, kind: input, shape index: {}]
  %s3 = inlined_call_operand.hbm [shape: f32[128,128], index: 3, kind: input, shape index: {}]
  %s4 = inlined_call_operand.vmem [shape: f32[1,128], index: 4, kind: input, shape index: {}]
  %s5 = inlined_call_operand.hbm [shape: f32[8,128], index: 5, kind: output, shape index: {}]
  %s6 = sld [smem:[#allocation0]]
  $region42: #{tpu_custom_call.1} parent=0
    _
  %s8 = ssub.s32 1, %s6
  %s9 = scalar_select 0, %s8, %s6
  $region1: #{tpu_custom_call.1} parent=0
    #allocation2 [shape = 'u8[4096]{0}', space=vmem, size = 0x1000, scoped, tag = 'input window, operand 0, single buffered']
    #allocation3 [shape = 's32[1]{0}', space=sflag, size = 0x4, scoped, tag = 'scoped memory for tpu_custom_call.1']
    #allocation4 [shape = 's32[1]{0}', space=sflag, size = 0x4, scoped, tag = 'scoped memory for tpu_custom_call.1']
    #allocation5 [shape = 'u8[65536]{0}', space=vmem, size = 0x10000, scoped, tag = 'input window, operand 1, single buffered']
    #allocation6 [shape = 's32[1]{0}', space=sflag, size = 0x4, scoped, tag = 'scoped memory for tpu_custom_call.1']
    #allocation7 [shape = 'u8[65536]{0}', space=vmem, size = 0x10000, scoped, tag = 'input window, operand 3, single buffered']
    #allocation8 [shape = 'u8[4096]{0}', space=vmem, size = 0x1000, scoped, tag = 'output window, operand 0, single buffered']
    %10 = vsyncpa [#allocation3], 0
    %11 = vsyncpa [#allocation6], 0
    %12 = vsyncpa [#allocation4], 0
    // Predicated region
    $region2: #{tpu_custom_call.1} parent=1 // pred_check
      _
    $region3: #{tpu_custom_call.1} parent=1 // pred_check_branch
      %14 = sbr.rel (0) target = $region5
    $region4: #{tpu_custom_call.1} parent=1 // pred_region
      %s16 = ssub.s32 128, 128
      %17 = vsyncadd [#allocation3], %s16
      %s19 = sshll.u32 [#allocation2], 4
      %s20 = int_to_ptr.vmem [resolvable:$true] %s19
      %22 = dma.hbm_to_vmem [thread:$0]  %s0, 128, %s20, [#allocation3]
    $region5: #{tpu_custom_call.1} parent=1 // pred_fallthru
      _
    // Predicated region
    $region6: #{tpu_custom_call.1} parent=1 // pred_check
      _
    $region7: #{tpu_custom_call.1} parent=1 // pred_check_branch
      %24 = sbr.rel (0) target = $region9
    $region8: #{tpu_custom_call.1} parent=1 // pred_region
      %s26 = ssub.s32 2048, 2048
      %27 = vsyncadd [#allocation6], %s26
      %s28 = sshll.u32 [#allocation5], 4
      %s29 = int_to_ptr.vmem [resolvable:$true] %s28
      %34 = dma.hbm_to_vmem [thread:$0]  %s1, 2048, %s29, [#allocation6], 128, 128, 8
    $region9: #{tpu_custom_call.1} parent=1 // pred_fallthru
      _
    // Predicated region
    $region10: #{tpu_custom_call.1} parent=1 // pred_check
      _
    $region11: #{tpu_custom_call.1} parent=1 // pred_check_branch
      %36 = sbr.rel (0) target = $region13
    $region12: #{tpu_custom_call.1} parent=1 // pred_region
      _
    $region13: #{tpu_custom_call.1} parent=1 // pred_fallthru
      _
    // Predicated region
    $region14: #{tpu_custom_call.1} parent=1 // pred_check
      _
    $region15: #{tpu_custom_call.1} parent=1 // pred_check_branch
      %38 = sbr.rel (0) target = $region17
    $region16: #{tpu_custom_call.1} parent=1 // pred_region
      %s40 = ssub.s32 2048, 2048
      %41 = vsyncadd [#allocation6], %s40
      %s42 = sshll.u32 [#allocation7], 4
      %s43 = int_to_ptr.vmem [resolvable:$true] %s42
      %48 = dma.hbm_to_vmem [thread:$0]  %s3, 2048, %s43, [#allocation6], 128, 128, 8
    $region17: #{tpu_custom_call.1} parent=1 // pred_fallthru
      _
    // Predicated region
    $region18: #{tpu_custom_call.1} parent=1 // pred_check
      _
    $region19: #{tpu_custom_call.1} parent=1 // pred_check_branch
      %50 = sbr.rel (0) target = $region21
    $region20: #{tpu_custom_call.1} parent=1 // pred_region
      _
    $region21: #{tpu_custom_call.1} parent=1 // pred_fallthru
      _
    // Predicated region
    $region22: #{tpu_custom_call.1} parent=1 // pred_check
      _
    $region23: #{tpu_custom_call.1} parent=1 // pred_check_branch
      %52 = sbr.rel (0) target = $region25
    $region24: #{tpu_custom_call.1} parent=1 // pred_region
      %53 = dma.done [#allocation3], 128
    $region25: #{tpu_custom_call.1} parent=1 // pred_fallthru
      _
    // Predicated region
    $region26: #{tpu_custom_call.1} parent=1 // pred_check
      _
    $region27: #{tpu_custom_call.1} parent=1 // pred_check_branch
      %55 = sbr.rel (0) target = $region29
    $region28: #{tpu_custom_call.1} parent=1 // pred_region
      %56 = dma.done [#allocation6], 2048
    $region29: #{tpu_custom_call.1} parent=1 // pred_fallthru
      _
    // Predicated region
    $region30: #{tpu_custom_call.1} parent=1 // pred_check
      _
    $region31: #{tpu_custom_call.1} parent=1 // pred_check_branch
      %58 = sbr.rel (0) target = $region33
    $region32: #{tpu_custom_call.1} parent=1 // pred_region
      %59 = dma.done [#allocation6], 2048
    $region33: #{tpu_custom_call.1} parent=1 // pred_fallthru
      _
    %v60 = vld [vmem:[#allocation2] sm:$0xff]
    %v61 = vld [vmem:[#allocation5] sm:$0xff]
    %v62 = vld [vmem:[#allocation5 + $0x8] sm:$0xff]
    %v63 = vld [vmem:[#allocation5 + $0x10] sm:$0xff]
    %v64 = vld [vmem:[#allocation5 + $0x18] sm:$0xff]
    %v65 = vld [vmem:[#allocation5 + $0x20] sm:$0xff]
    %v66 = vld [vmem:[#allocation5 + $0x28] sm:$0xff]
    %v67 = vld [vmem:[#allocation5 + $0x30] sm:$0xff]
    %v68 = vld [vmem:[#allocation5 + $0x38] sm:$0xff]
    %v69 = vld [vmem:[#allocation5 + $0x40] sm:$0xff]
    %v70 = vld [vmem:[#allocation5 + $0x48] sm:$0xff]
    %v71 = vld [vmem:[#allocation5 + $0x50] sm:$0xff]
    %v72 = vld [vmem:[#allocation5 + $0x58] sm:$0xff]
    %v73 = vld [vmem:[#allocation5 + $0x60] sm:$0xff]
    %v74 = vld [vmem:[#allocation5 + $0x68] sm:$0xff]
    %v75 = vld [vmem:[#allocation5 + $0x70] sm:$0xff]
    %v76 = vld [vmem:[#allocation5 + $0x78] sm:$0xff]
    %v77 = vld [vmem:[%s2] sm:$0x1]
    %v79 = vlaneseq
    %v80 = vshrl.u32 %v79, 7
    %v81 = vsub.s32 0, %v80
    %v82 = vrot.slane %v77, %v81
    %84 = vmatprep.subr.mxu0 0.0
    %85 = vmatpush1.msra.mxu0 %v61
    %86 = vmatprep.subr.mxu0 0.0
    %87 = vmatpush1.msra.mxu0 %v62
    %88 = vmatprep.subr.mxu0 0.0
    %89 = vmatpush1.msra.mxu0 %v63
    %90 = vmatprep.subr.mxu0 0.0
    %91 = vmatpush1.msra.mxu0 %v64
    %92 = vmatprep.subr.mxu0 0.0
    %93 = vmatpush1.msra.mxu0 %v65
    %94 = vmatprep.subr.mxu0 0.0
    %95 = vmatpush1.msra.mxu0 %v66
    %96 = vmatprep.subr.mxu0 0.0
    %97 = vmatpush1.msra.mxu0 %v67
    %98 = vmatprep.subr.mxu0 0.0
    %99 = vmatpush1.msra.mxu0 %v68
    %100 = vmatprep.subr.mxu0 0.0
    %101 = vmatpush1.msra.mxu0 %v69
    %102 = vmatprep.subr.mxu0 0.0
    %103 = vmatpush1.msra.mxu0 %v70
    %104 = vmatprep.subr.mxu0 0.0
    %105 = vmatpush1.msra.mxu0 %v71
    %106 = vmatprep.subr.mxu0 0.0
    %107 = vmatpush1.msra.mxu0 %v72
    %108 = vmatprep.subr.mxu0 0.0
    %109 = vmatpush1.msra.mxu0 %v73
    %110 = vmatprep.subr.mxu0 0.0
    %111 = vmatpush1.msra.mxu0 %v74
    %112 = vmatprep.subr.mxu0 0.0
    %113 = vmatpush1.msra.mxu0 %v75
    %114 = vmatprep.subr.mxu0 0.0
    %115 = vmatpush1.msra.mxu0 %v76
    %116 = vmatprep.subr.mxu0 0.0
    %117 = vmatpush1.msra.mxu0 0.0
    %118 = vmatprep.subr.mxu0 0.0
    %119 = vmatpush1.msra.mxu0 0.0
    %120 = vmatprep.subr.mxu0 0.0
    %121 = vmatpush1.msra.mxu0 0.0
    %122 = vmatprep.subr.mxu0 0.0
    %123 = vmatpush1.msra.mxu0 0.0
    %124 = vmatprep.subr.mxu0 0.0
    %125 = vmatpush1.msra.mxu0 0.0
    %126 = vmatprep.subr.mxu0 0.0
    %127 = vmatpush1.msra.mxu0 0.0
    %128 = vmatprep.subr.mxu0 0.0
    %129 = vmatpush1.msra.mxu0 0.0
    %130 = vmatprep.subr.mxu0 0.0
    %131 = vmatpush1.msra.mxu0 0.0
    %132 = vmatprep.subr.mxu0 0.0
    %133 = vmatpush1.msra.mxu0 0.0
    %134 = vmatprep.subr.mxu0 0.0
    %135 = vmatpush1.msra.mxu0 0.0
    %136 = vmatprep.subr.mxu0 0.0
    %137 = vmatpush1.msra.mxu0 0.0
    %138 = vmatprep.subr.mxu0 0.0
    %139 = vmatpush1.msra.mxu0 0.0
    %140 = vmatprep.subr.mxu0 0.0
    %141 = vmatpush1.msra.mxu0 0.0
    %142 = vmatprep.subr.mxu0 0.0
    %143 = vmatpush1.msra.mxu0 0.0
    %144 = vmatprep.subr.mxu0 0.0
    %145 = vmatpush1.msra.mxu0 0.0
    %146 = vmatprep.subr.mxu0 0.0
    %147 = vmatpush1.msra.mxu0 0.0
    %148 = vmatprep.mubr.f32.mxu0 0.0
    %149 = vmatmul.mubr.f32.gmra.mrb[0].mxu0 %v60
    %v150 = vpop.f32.mrb[0].mxu0
    %v151 = vadd.f32 %v82, %v150
    %v152 = vpop.f32.mrb[0].mxu0
    %153 = vdwg.mxu0
    %v154 = vmax.f32 %v151, 0.0
    %v155 = vld [vmem:[#allocation7] sm:$0xff]
    %v156 = vld [vmem:[#allocation7 + $0x8] sm:$0xff]
    %v157 = vld [vmem:[#allocation7 + $0x10] sm:$0xff]
    %v158 = vld [vmem:[#allocation7 + $0x18] sm:$0xff]
    %v159 = vld [vmem:[#allocation7 + $0x20] sm:$0xff]
    %v160 = vld [vmem:[#allocation7 + $0x28] sm:$0xff]
    %v161 = vld [vmem:[#allocation7 + $0x30] sm:$0xff]
    %v162 = vld [vmem:[#allocation7 + $0x38] sm:$0xff]
    %v163 = vld [vmem:[#allocation7 + $0x40] sm:$0xff]
    %v164 = vld [vmem:[#allocation7 + $0x48] sm:$0xff]
    %v165 = vld [vmem:[#allocation7 + $0x50] sm:$0xff]
    %v166 = vld [vmem:[#allocation7 + $0x58] sm:$0xff]
    %v167 = vld [vmem:[#allocation7 + $0x60] sm:$0xff]
    %v168 = vld [vmem:[#allocation7 + $0x68] sm:$0xff]
    %v169 = vld [vmem:[#allocation7 + $0x70] sm:$0xff]
    %v170 = vld [vmem:[#allocation7 + $0x78] sm:$0xff]
    %v171 = vld [vmem:[%s4] sm:$0x1]
    %v173 = vlaneseq
    %v174 = vshrl.u32 %v173, 7
    %v175 = vsub.s32 0, %v174
    %v176 = vrot.slane %v171, %v175
    %178 = vmatprep.subr.mxu0 0.0
    %179 = vmatpush1.msra.mxu0 %v155
    %180 = vmatprep.subr.mxu0 0.0
    %181 = vmatpush1.msra.mxu0 %v156
    %182 = vmatprep.subr.mxu0 0.0
    %183 = vmatpush1.msra.mxu0 %v157
    %184 = vmatprep.subr.mxu0 0.0
    %185 = vmatpush1.msra.mxu0 %v158
    %186 = vmatprep.subr.mxu0 0.0
    %187 = vmatpush1.msra.mxu0 %v159
    %188 = vmatprep.subr.mxu0 0.0
    %189 = vmatpush1.msra.mxu0 %v160
    %190 = vmatprep.subr.mxu0 0.0
    %191 = vmatpush1.msra.mxu0 %v161
    %192 = vmatprep.subr.mxu0 0.0
    %193 = vmatpush1.msra.mxu0 %v162
    %194 = vmatprep.subr.mxu0 0.0
    %195 = vmatpush1.msra.mxu0 %v163
    %196 = vmatprep.subr.mxu0 0.0
    %197 = vmatpush1.msra.mxu0 %v164
    %198 = vmatprep.subr.mxu0 0.0
    %199 = vmatpush1.msra.mxu0 %v165
    %200 = vmatprep.subr.mxu0 0.0
    %201 = vmatpush1.msra.mxu0 %v166
    %202 = vmatprep.subr.mxu0 0.0
    %203 = vmatpush1.msra.mxu0 %v167
    %204 = vmatprep.subr.mxu0 0.0
    %205 = vmatpush1.msra.mxu0 %v168
    %206 = vmatprep.subr.mxu0 0.0
    %207 = vmatpush1.msra.mxu0 %v169
    %208 = vmatprep.subr.mxu0 0.0
    %209 = vmatpush1.msra.mxu0 %v170
    %210 = vmatprep.subr.mxu0 0.0
    %211 = vmatpush1.msra.mxu0 0.0
    %212 = vmatprep.subr.mxu0 0.0
    %213 = vmatpush1.msra.mxu0 0.0
    %214 = vmatprep.subr.mxu0 0.0
    %215 = vmatpush1.msra.mxu0 0.0
    %216 = vmatprep.subr.mxu0 0.0
    %217 = vmatpush1.msra.mxu0 0.0
    %218 = vmatprep.subr.mxu0 0.0
    %219 = vmatpush1.msra.mxu0 0.0
    %220 = vmatprep.subr.mxu0 0.0
    %221 = vmatpush1.msra.mxu0 0.0
    %222 = vmatprep.subr.mxu0 0.0
    %223 = vmatpush1.msra.mxu0 0.0
    %224 = vmatprep.subr.mxu0 0.0
    %225 = vmatpush1.msra.mxu0 0.0
    %226 = vmatprep.subr.mxu0 0.0
    %227 = vmatpush1.msra.mxu0 0.0
    %228 = vmatprep.subr.mxu0 0.0
    %229 = vmatpush1.msra.mxu0 0.0
    %230 = vmatprep.subr.mxu0 0.0
    %231 = vmatpush1.msra.mxu0 0.0
    %232 = vmatprep.subr.mxu0 0.0
    %233 = vmatpush1.msra.mxu0 0.0
    %234 = vmatprep.subr.mxu0 0.0
    %235 = vmatpush1.msra.mxu0 0.0
    %236 = vmatprep.subr.mxu0 0.0
    %237 = vmatpush1.msra.mxu0 0.0
    %238 = vmatprep.subr.mxu0 0.0
    %239 = vmatpush1.msra.mxu0 0.0
    %240 = vmatprep.subr.mxu0 0.0
    %241 = vmatpush1.msra.mxu0 0.0
    %242 = vmatprep.mubr.f32.mxu0 0.0
    %243 = vmatmul.mubr.f32.gmra.mrb[0].mxu0 %v154
    %v244 = vpop.f32.mrb[0].mxu0
    %v245 = vadd.f32 %v176, %v244
    %v246 = vpop.f32.mrb[0].mxu0
    %247 = vdwg.mxu0
    %248 = vst [vmem:[#allocation8] sm:$0xff] %v245
    // Predicated region
    $region34: #{tpu_custom_call.1} parent=1 // pred_check
      _
    $region35: #{tpu_custom_call.1} parent=1 // pred_check_branch
      %250 = sbr.rel (0) target = $region37
    $region36: #{tpu_custom_call.1} parent=1 // pred_region
      %s252 = ssub.s32 128, 128
      %253 = vsyncadd [#allocation4], %s252
      %s255 = sshll.u32 [#allocation8], 4
      %s256 = int_to_ptr.vmem [resolvable:$true] %s255
      %258 = dma.vmem_to_hbm [thread:$0]  %s256, 128, %s5, [#allocation4]
    $region37: #{tpu_custom_call.1} parent=1 // pred_fallthru
      _
    // Predicated region
    $region38: #{tpu_custom_call.1} parent=1 // pred_check
      _
    $region39: #{tpu_custom_call.1} parent=1 // pred_check_branch
      %260 = sbr.rel (0) target = $region41
    $region40: #{tpu_custom_call.1} parent=1 // pred_region
      %261 = dma.done [#allocation4], 128
    $region41: #{tpu_custom_call.1} parent=1 // pred_fallthru
      _
    %262 = vsyncpa [#allocation3], 1
    %263 = vsyncpa [#allocation6], 1
    %264 = vsyncpa [#allocation4], 1

</llo_original>
